<compile_context>
chip_gen: v7x
topology: tpu7x:2x2x1
jax: 0.10.0
libtpu: 0.0.40
codegen_flags: <defaults>
</compile_context>

<pallas_src>
import functools

import jax
import jax.numpy as jnp
from jax.experimental import pallas as pl
from jax.experimental.pallas import tpu as pltpu


# exp(_NEG_PAD / T) underflows to exactly 0, so padded classes contribute exactly
# 0 to every row sum.  It must stay FINITE: with -inf the kernel would compute
# 0 * (-inf - (-inf)) = NaN in the weighted term.  Do NOT "improve" this to -inf.
_NEG_PAD = -1e9

_MIN_GRID_STEPS = 8       # >= 4 tiles per TensorCore on v7x dual-TC
_MAX_BLOCK_ROWS = 4096
_LIVE_F32_TEMPS = 6       # conservative count of live (rows, C) f32 temporaries


def _round_up(x, m):
    return ((x + m - 1) // m) * m


def _vmem_capacity_bytes():
    try:
        return int(pltpu.get_tpu_info().vmem_capacity_bytes)
    except Exception:
        return 64 * 1024 * 1024   # v7x per-TC capacity: a safe floor everywhere


def _derive_tiling(n, c_eff, itemsize):
    """Pick (block_rows, vmem_limit_bytes) from the per-chip VMEM capacity.

    Accounts for 2 inputs x 2 pipeline buffers of the input dtype plus the f32
    intermediates materialized inside the kernel body.  Returns (None, None)
    when even a minimal tile does not fit (vocab-scale class counts).
    """
    cap = _vmem_capacity_bytes()
    budget = int(cap * 0.55)   # headroom for Mosaic scratch / output buffers
    per_row = 4 * c_eff * itemsize + _LIVE_F32_TEMPS * c_eff * 4

    rows = budget // per_row
    if rows < 16:
        return None, None
    rows = min(rows, _MAX_BLOCK_ROWS)
    # Guarantee enough grid steps for DMA/compute overlap + megacore sharding.
    rows = min(rows, _round_up(pl.cdiv(n, _MIN_GRID_STEPS), 16))
    rows = max(16, (rows // 16) * 16)

    vmem_limit = max(32 * 1024 * 1024, min(budget, cap - 8 * 1024 * 1024))
    return rows, vmem_limit


def _maybe_pad_classes(y_s, y_t, c):
    """Pad the class dim to a multiple of 128 (lane-dense) only when cheap."""
    c_pad = _round_up(c, 128)
    # Pad only when the extra HBM traffic is <= 1/8 of the real data; for narrow
    # class counts the masked lane ops are free (VPU/XLU slack), the bytes aren't.
    if c_pad != c and (c_pad - c) * 8 <= c:
        pad = ((0, 0), (0, c_pad - c))
        y_s = jnp.pad(y_s, pad, constant_values=_NEG_PAD)
        y_t = jnp.pad(y_t, pad, constant_values=_NEG_PAD)
        return y_s, y_t, c_pad
    return y_s, y_t, c


def _distill_kl_kernel(ys_ref, yt_ref, out_ref, *, inv_t):
    # Upcast + temperature scale; compute is f32 regardless of input dtype.
    s = ys_ref[...].astype(jnp.float32) * inv_t
    t = yt_ref[...].astype(jnp.float32) * inv_t

    # Student: only the per-row log-sum-exp is needed.
    s_shift = s - jnp.max(s, axis=1, keepdims=True)
    s_lse = jnp.log(jnp.sum(jnp.exp(s_shift), axis=1, keepdims=True))

    # Teacher: numerically stable softmax pieces.
    t_shift = t - jnp.max(t, axis=1, keepdims=True)
    t_exp = jnp.exp(t_shift)
    t_sum = jnp.sum(t_exp, axis=1, keepdims=True)

    # sum_j p_t (log p_t - log p_s)
    #   = (1/t_sum) * sum_j t_exp * (t_shift - s_shift) + (s_lse - log t_sum)
    # (uses sum_j p_t == 1).  Avoids materializing log_p_s / log_p_t / p_t / kl.
    weighted = jnp.sum(t_exp * (t_shift - s_shift), axis=1, keepdims=True)
    # Exact divide (NOT approx reciprocal): keeps the result within ~1e-5 of the
    # reference; it is O(rows) work so the cost is negligible either way.
    row_kl = weighted / t_sum + (s_lse - jnp.log(t_sum))        # (rows, 1)

    # One extra cross-sublane reduce (XLU, essentially free): a single scalar
    # per tile, stored lane-dense so the output costs ~nothing in VMEM/stores.
    tile_kl = jnp.sum(row_kl, axis=0, keepdims=True)            # (1, 1)
    out_ref[...] = jnp.broadcast_to(tile_kl[None, :, :], (1, 1, 128))


def _distill_kl_jax(y_s, y_t, T):
    """Pure-JAX reference / small-input fallback (identical math, f32 compute)."""
    s = y_s.astype(jnp.float32) / T
    t = y_t.astype(jnp.float32) / T
    log_p_s = jax.nn.log_softmax(s, axis=1)
    log_p_t = jax.nn.log_softmax(t, axis=1)
    p_t = jax.nn.softmax(t, axis=1)
    return jnp.sum(p_t * (log_p_t - log_p_s)) * (float(T) ** 2) / y_s.shape[0]


def distill_kl(y_s, y_t, T, *, min_kernel_elems=32 * 1024):
    """DistillKL forward: kl_div(log_softmax(y_s/T), softmax(y_t/T), sum) * T^2 / N.

    Inputs may be f32 or bf16 (bf16 halves HBM traffic; compute is f32 in-kernel).
    """
    assert y_s.shape == y_t.shape and y_s.ndim == 2
    assert y_s.dtype == y_t.dtype
    n, c = y_s.shape

    # Tiny inputs: launch + per-step overhead dominates -> pure-JAX path.
    if n * c < min_kernel_elems:
        return _distill_kl_jax(y_s, y_t, T)

    # Optional lane-dense class padding (no-op unless it is nearly free).
    y_s, y_t, c_eff = _maybe_pad_classes(y_s, y_t, c)

    itemsize = jnp.dtype(y_s.dtype).itemsize
    block_rows, vmem_limit = _derive_tiling(n, c_eff, itemsize)
    if block_rows is None:
        # TODO(synk): class-dim (two-pass online-softmax) tiling for vocab-scale C.
        return _distill_kl_jax(y_s, y_t, T)

    # Pad the batch so the grid divides evenly.  Zero rows (identical in student
    # and teacher) contribute exactly 0 to the KL sum.
    n_pad = _round_up(n, block_rows)
    if n_pad != n:
        y_s = jnp.pad(y_s, ((0, n_pad - n), (0, 0)))
        y_t = jnp.pad(y_t, ((0, n_pad - n), (0, 0)))

    num_tiles = n_pad // block_rows
    # NOTE: inv_t is baked in -> a new T value retraces/recompiles.  That is fine
    # for a fixed distillation temperature; pass T via scalar prefetch if it varies.
    kernel = functools.partial(_distill_kl_kernel, inv_t=float(1.0 / T))

    tile_kl = pl.pallas_call(
        kernel,
        out_shape=jax.ShapeDtypeStruct((num_tiles, 1, 128), jnp.float32),
        grid_spec=pltpu.PrefetchScalarGridSpec(
            num_scalar_prefetch=0,
            grid=(num_tiles,),
            in_specs=[
                pl.BlockSpec((block_rows, c_eff), lambda i: (i, 0)),
                pl.BlockSpec((block_rows, c_eff), lambda i: (i, 0)),
            ],
            out_specs=pl.BlockSpec((1, 1, 128), lambda i: (i, 0, 0)),
        ),
        compiler_params=pltpu.CompilerParams(
            # All row tiles are independent -> shard across cores where available.
            dimension_semantics=("parallel",),
            # Sized from the same per-chip budget used to derive block_rows.
            vmem_limit_bytes=vmem_limit,
        ),
    )(y_s, y_t)

    # Tiny epilogue: sum the per-tile scalars (padded rows contribute 0) + scale.
    return jnp.sum(tile_kl[:, 0, 0]) * (float(T) ** 2 / n)


if __name__ == "__main__":
    T = 4.0
    key = jax.random.PRNGKey(0)
    k1, k2, k3, k4 = jax.random.split(key, 4)

    # --- Case 1: kernel path, f32, ragged batch (row padding) + class padding.
    N, C = 500, 250
    y_s = jax.random.normal(k1, (N, C), dtype=jnp.float32)
    y_t = jax.random.normal(k2, (N, C), dtype=jnp.float32)
    loss = distill_kl(y_s, y_t, T)
    jax.block_until_ready(loss)
    ref = _distill_kl_jax(y_s, y_t, T)
    assert jnp.allclose(loss, ref, rtol=1e-4, atol=1e-5), (loss, ref)

    # --- Case 2: kernel path, bf16 inputs (half the HBM traffic; f32 compute).
    loss16 = distill_kl(y_s.astype(jnp.bfloat16), y_t.astype(jnp.bfloat16), T)
    jax.block_until_ready(loss16)
    ref16 = _distill_kl_jax(y_s.astype(jnp.bfloat16), y_t.astype(jnp.bfloat16), T)
    assert jnp.allclose(loss16, ref16, rtol=1e-3, atol=1e-3), (loss16, ref16)

    # --- Case 3: tiny-input fallback (pure-JAX path).
    ys_small = jax.random.normal(k3, (16, 32), dtype=jnp.float32)
    yt_small = jax.random.normal(k4, (16, 32), dtype=jnp.float32)
    loss_small = distill_kl(ys_small, yt_small, T)
    jax.block_until_ready(loss_small)
    ref_small = _distill_kl_jax(ys_small, yt_small, T)
    assert jnp.allclose(loss_small, ref_small, rtol=1e-5, atol=1e-5)

    print("KERNEL_OK")
</pallas_src>

<mosaic_0001>
module attributes {stable_mosaic.version = 11 : i64} {
  func.func @_distill_kl_kernel(%arg0: i32, %arg1: memref<64x256xf32, #tpu.memory_space<vmem>>, %arg2: memref<64x256xf32, #tpu.memory_space<vmem>>, %arg3: memref<1x1x128xf32, #tpu.memory_space<vmem>>) attributes {dimension_semantics = [#tpu.dimension_semantics<parallel>], iteration_bounds = array<i64: 8>, scalar_prefetch = 0 : i64, scratch_operands = 0 : i64, tpu.core_type = #tpu.core_type<tc>, window_params = [{transform_indices = @transform_0, window_bounds = array<i64: 64, 256>}, {transform_indices = @transform_1, window_bounds = array<i64: 64, 256>}, {transform_indices = @transform_2, window_bounds = array<i64: 1, 1, 128>}]} {
    %c0 = arith.constant 0 : index
    %c0_0 = arith.constant 0 : index
    %0 = vector.load %arg1[%c0, %c0_0] : memref<64x256xf32, #tpu.memory_space<vmem>>, vector<64x256xf32>
    %cst = arith.constant 2.500000e-01 : f32
    %1 = vector.broadcast %cst : f32 to vector<64x256xf32>
    %2 = arith.mulf %0, %1 : vector<64x256xf32>
    %c0_1 = arith.constant 0 : index
    %c0_2 = arith.constant 0 : index
    %3 = vector.load %arg2[%c0_1, %c0_2] : memref<64x256xf32, #tpu.memory_space<vmem>>, vector<64x256xf32>
    %cst_3 = arith.constant 2.500000e-01 : f32
    %4 = vector.broadcast %cst_3 : f32 to vector<64x256xf32>
    %5 = arith.mulf %3, %4 : vector<64x256xf32>
    %cst_4 = arith.constant dense<0xFF800000> : vector<64xf32>
    %6 = vector.multi_reduction <maximumf>, %2, %cst_4 [1] : vector<64x256xf32> to vector<64xf32>
    %7 = vector.shape_cast %6 : vector<64xf32> to vector<64x1xf32>
    %8 = vector.broadcast %7 : vector<64x1xf32> to vector<64x256xf32>
    %9 = arith.subf %2, %8 : vector<64x256xf32>
    %10 = math.exp %9 : vector<64x256xf32>
    %cst_5 = arith.constant dense<0.000000e+00> : vector<64xf32>
    %11 = vector.multi_reduction <add>, %10, %cst_5 [1] : vector<64x256xf32> to vector<64xf32>
    %12 = vector.shape_cast %11 : vector<64xf32> to vector<64x1xf32>
    %13 = math.log %12 : vector<64x1xf32>
    %cst_6 = arith.constant dense<0xFF800000> : vector<64xf32>
    %14 = vector.multi_reduction <maximumf>, %5, %cst_6 [1] : vector<64x256xf32> to vector<64xf32>
    %15 = vector.shape_cast %14 : vector<64xf32> to vector<64x1xf32>
    %16 = vector.broadcast %15 : vector<64x1xf32> to vector<64x256xf32>
    %17 = arith.subf %5, %16 : vector<64x256xf32>
    %18 = math.exp %17 : vector<64x256xf32>
    %cst_7 = arith.constant dense<0.000000e+00> : vector<64xf32>
    %19 = vector.multi_reduction <add>, %18, %cst_7 [1] : vector<64x256xf32> to vector<64xf32>
    %20 = vector.shape_cast %19 : vector<64xf32> to vector<64x1xf32>
    %21 = arith.subf %17, %9 : vector<64x256xf32>
    %22 = arith.mulf %18, %21 : vector<64x256xf32>
    %cst_8 = arith.constant dense<0.000000e+00> : vector<64xf32>
    %23 = vector.multi_reduction <add>, %22, %cst_8 [1] : vector<64x256xf32> to vector<64xf32>
    %24 = vector.shape_cast %23 : vector<64xf32> to vector<64x1xf32>
    %25 = arith.divf %24, %20 : vector<64x1xf32>
    %26 = math.log %20 : vector<64x1xf32>
    %27 = arith.subf %13, %26 : vector<64x1xf32>
    %28 = arith.addf %25, %27 : vector<64x1xf32>
    %cst_9 = arith.constant dense<0.000000e+00> : vector<1xf32>
    %29 = vector.multi_reduction <add>, %28, %cst_9 [0] : vector<64x1xf32> to vector<1xf32>
    %30 = vector.shape_cast %29 : vector<1xf32> to vector<1x1xf32>
    %31 = vector.shape_cast %30 : vector<1x1xf32> to vector<1x1x1xf32>
    %32 = vector.shape_cast %31 : vector<1x1x1xf32> to vector<1x1x1xf32>
    %33 = vector.broadcast %32 : vector<1x1x1xf32> to vector<1x1x128xf32>
    %c0_10 = arith.constant 0 : index
    %c0_11 = arith.constant 0 : index
    %c0_12 = arith.constant 0 : index
    %34 = vector.load %arg3[%c0_10, %c0_11, %c0_12] : memref<1x1x128xf32, #tpu.memory_space<vmem>>, vector<1x1x128xf32>
    tpu.vector_store %arg3[%c0_10, %c0_11, %c0_12], %33 {strides = array<i32>} : memref<1x1x128xf32, #tpu.memory_space<vmem>>, vector<1x1x128xf32>,
    return
  }
  func.func @transform_0(%arg0: i32) -> (i32, i32) {
    %c0_i32 = arith.constant 0 : i32
    %c0_i32_0 = arith.constant 0 : i32
    return %arg0, %c0_i32 : i32, i32
  }
  func.func @transform_1(%arg0: i32) -> (i32, i32) {
    %c0_i32 = arith.constant 0 : i32
    %c0_i32_0 = arith.constant 0 : i32
    return %arg0, %c0_i32 : i32, i32
  }
  func.func @transform_2(%arg0: i32) -> (i32, i32, i32) {
    %c0_i32 = arith.constant 0 : i32
    %c0_i32_0 = arith.constant 0 : i32
    %c0_i32_1 = arith.constant 0 : i32
    return %arg0, %c0_i32, %c0_i32_0 : i32, i32, i32
  }
}

</mosaic_0001>

<llo_original>
// kernel: tpu_custom_call.1
$region0: #{tpu_custom_call.1}
  #allocation0 [shape = 'u32[]', space=smem, size = 0x4, offset = 0x4, fixed_abs, tag = 'smem constant byte address 0x4 - core index']
  #allocation1 [shape = 'u32[144,128]{1,0:T(1,128)}', space=vmem, size = 0x12000, scoped, tag = 'internal scratch']
  %s0 = inlined_call_operand.hbm [shape: f32[512,256], index: 0, kind: input, shape index: {}]
  %s1 = inlined_call_operand.hbm [shape: f32[512,256], index: 1, kind: input, shape index: {}]
  %s2 = inlined_call_operand.hbm [shape: f32[8,1,128], index: 2, kind: output, shape index: {}]
  %s3 = sld [smem:[#allocation0]]
  $region49: #{tpu_custom_call.1} parent=0
    _
  %s5 = ssub.s32 1, %s3
  %s6 = scalar_select 0, %s5, %s3
  $region1: #{tpu_custom_call.1} parent=0
    #allocation2 [shape = 'u8[131072]{0}', space=vmem, size = 0x20000, scoped, tag = 'input window, operand 0']
    #allocation3 [shape = 's32[2]{0}', space=sflag, size = 0x8, scoped, tag = 'scoped memory for tpu_custom_call.1']
    #allocation4 [shape = 's32[2]{0}', space=sflag, size = 0x8, scoped, tag = 'scoped memory for tpu_custom_call.1']
    #allocation5 [shape = 'u8[131072]{0}', space=vmem, size = 0x20000, scoped, tag = 'input window, operand 1']
    #allocation6 [shape = 's32[2]{0}', space=sflag, size = 0x8, scoped, tag = 'scoped memory for tpu_custom_call.1']
    #allocation7 [shape = 'u8[1024]{0}', space=vmem, size = 0x400, scoped, tag = 'output window, operand 0']
    %7 = vsyncpa [#allocation3], 0
    %s8 = scalar_lea.sflag [#allocation3], 1
    %9 = vsyncpa %s8, 0
    %10 = vsyncpa [#allocation6], 0
    %s11 = scalar_lea.sflag [#allocation6], 1
    %12 = vsyncpa %s11, 0
    %13 = vsyncpa [#allocation4], 0
    %s14 = scalar_lea.sflag [#allocation4], 1
    %15 = vsyncpa %s14, 0
    loop: start=0, step=1, limit=10
    $region2: #{tpu_custom_call.1} parent=1 // loop_pre_header
      _
    $region3: #{tpu_custom_call.1} parent=1 // loop_header
      %s17 = sphi 0, %s21
      %p18 = scmp.ge.s32.totalorder %s17, 10
      %s27 = sphi 0, %s29
      %s30 = sphi 0, %s27
      %s31 = sphi 0, %s30
      %s47 = sphi 0, %s31
      %s53 = sphi 0, %s55
      %s56 = sphi 0, %s53
      %s57 = sphi 0, %s56
      %s73 = sphi 0, %s57
      %s79 = sphi 0, %s81
      %s82 = sphi 0, %s79
      %s83 = sphi 0, %s82
      %s99 = sphi 0, %s83
    $region4: #{tpu_custom_call.1} parent=1 // loop_header_branch
      %20 = sbr.rel (%p18) target = $region8
    $region5: #{tpu_custom_call.1} parent=1 // loop_body
      %s22 = ssub.s32 %s17, 1
      %s23 = ssub.s32 %s17, 2
      %s24 = sadd.s32 %s17, 1
      %s25 = ssub.s32 %s17, %s24
      %p26 = scmp.eq.s32.totalorder %s25, 0
      %s28 = sadd.s32 %s27, 1
      %s29 = scalar_select %p26, %s27, %s28
      %p32 = pneg %p26
      %p33 = scmp.eq.s32.totalorder %s17, 7
      %p34 = por %p32, %p33
      %p35 = scmp.ne.s32.totalorder %s27, %s30
      %p36 = scmp.eq.s32.totalorder %s17, 0
      %p37 = por %p35, %p36
      %p38 = scmp.ne.s32.totalorder %s27, %s30
      %p39 = scmp.eq.s32.totalorder %s22, 7
      %p40 = por %p38, %p39
      %p41 = scmp.ne.s32.totalorder %s30, %s31
      %p42 = scmp.eq.s32.totalorder %s22, 0
      %p43 = por %p41, %p42
      %p44 = scmp.ne.s32.totalorder %s30, %s31
      %p45 = scmp.eq.s32.totalorder %s23, 7
      %p46 = por %p44, %p45
      %p48 = scmp.ne.s32.totalorder %s31, %s47
      %p49 = scmp.eq.s32.totalorder %s23, 0
      %p50 = por %p48, %p49
      %s51 = ssub.s32 %s17, %s24
      %p52 = scmp.eq.s32.totalorder %s51, 0
      %s54 = sadd.s32 %s53, 1
      %s55 = scalar_select %p52, %s53, %s54
      %p58 = pneg %p52
      %p59 = scmp.eq.s32.totalorder %s17, 7
      %p60 = por %p58, %p59
      %p61 = scmp.ne.s32.totalorder %s53, %s56
      %p62 = scmp.eq.s32.totalorder %s17, 0
      %p63 = por %p61, %p62
      %p64 = scmp.ne.s32.totalorder %s53, %s56
      %p65 = scmp.eq.s32.totalorder %s22, 7
      %p66 = por %p64, %p65
      %p67 = scmp.ne.s32.totalorder %s56, %s57
      %p68 = scmp.eq.s32.totalorder %s22, 0
      %p69 = por %p67, %p68
      %p70 = scmp.ne.s32.totalorder %s56, %s57
      %p71 = scmp.eq.s32.totalorder %s23, 7
      %p72 = por %p70, %p71
      %p74 = scmp.ne.s32.totalorder %s57, %s73
      %p75 = scmp.eq.s32.totalorder %s23, 0
      %p76 = por %p74, %p75
      %s77 = ssub.s32 %s17, %s24
      %p78 = scmp.eq.s32.totalorder %s77, 0
      %s80 = sadd.s32 %s79, 1
      %s81 = scalar_select %p78, %s79, %s80
      %p84 = pneg %p78
      %p85 = scmp.eq.s32.totalorder %s17, 7
      %p86 = por %p84, %p85
      %p87 = scmp.ne.s32.totalorder %s79, %s82
      %p88 = scmp.eq.s32.totalorder %s17, 0
      %p89 = por %p87, %p88
      %p90 = scmp.ne.s32.totalorder %s79, %s82
      %p91 = scmp.eq.s32.totalorder %s22, 7
      %p92 = por %p90, %p91
      %p93 = scmp.ne.s32.totalorder %s82, %s83
      %p94 = scmp.eq.s32.totalorder %s22, 0
      %p95 = por %p93, %p94
      %p96 = scmp.ne.s32.totalorder %s82, %s83
      %p97 = scmp.eq.s32.totalorder %s23, 7
      %p98 = por %p96, %p97
      %p100 = scmp.ne.s32.totalorder %s83, %s99
      %p101 = scmp.eq.s32.totalorder %s23, 0
      %p102 = por %p100, %p101
      %p103 = scmp.le.s32.totalorder 1, %s17
      %p104 = scmp.lt.s32.totalorder %s17, 9
      %p105 = pnand %p103, %p104
      %p106 = pneg %p105
      // Predicated region
      $region9: #{tpu_custom_call.1} parent=5 // pred_check
        _
      $region10: #{tpu_custom_call.1} parent=5 // pred_check_branch
        %108 = sbr.rel (%p105) target = $region12
      $region11: #{tpu_custom_call.1} parent=5 // pred_region
        %s109 = ssub.s32 %s17, 1
      $region12: #{tpu_custom_call.1} parent=5 // pred_fallthru
        _
      %p110 = scmp.lt.s32.totalorder %s17, 8
      // Predicated region
      $region13: #{tpu_custom_call.1} parent=5 // pred_check
        %p111 = pneg %p110
      $region14: #{tpu_custom_call.1} parent=5 // pred_check_branch
        %113 = sbr.rel (%p111) target = $region16
      $region15: #{tpu_custom_call.1} parent=5 // pred_region
        // Predicated region
        $region17: #{tpu_custom_call.1} parent=15 // pred_check
          %p114 = pneg %p37
        $region18: #{tpu_custom_call.1} parent=15 // pred_check_branch
          %116 = sbr.rel (%p114) target = $region20
        $region19: #{tpu_custom_call.1} parent=15 // pred_region
          %s117 = sand.u32 %s27, 1
          %s118 = scalar_lea.sflag [#allocation3], %s117
          %s119 = sand.u32 %s27, 1
          %s120 = smul.addr %s119, 128
          %s121 = scalar_lea.vmem [#allocation2], %s120
          %s122 = smul.u32 8, %s17
          %s124 = ssub.s32 2048, 2048
          %125 = vsyncadd %s118, %s124
          %s126 = smul.addr %s122, 2
          %s127 = smul.addr %s126, 128
          %s128 = scalar_lea.hbm %s0, %s127
          %s129 = sshll.u32 %s121, 4
          %s130 = int_to_ptr.vmem [resolvable:$true] %s129
          %135 = dma.hbm_to_vmem [thread:$0]  %s128, 2048, %s130, %s118, 256, 256, 16
        $region20: #{tpu_custom_call.1} parent=15 // pred_fallthru
          _
        // Predicated region
        $region21: #{tpu_custom_call.1} parent=15 // pred_check
          %p136 = pneg %p63
        $region22: #{tpu_custom_call.1} parent=15 // pred_check_branch
          %138 = sbr.rel (%p136) target = $region24
        $region23: #{tpu_custom_call.1} parent=15 // pred_region
          %s139 = sand.u32 %s53, 1
          %s140 = scalar_lea.sflag [#allocation6], %s139
          %s141 = sand.u32 %s53, 1
          %s142 = smul.addr %s141, 128
          %s143 = scalar_lea.vmem [#allocation5], %s142
          %s144 = smul.u32 8, %s17
          %s146 = ssub.s32 2048, 2048
          %147 = vsyncadd %s140, %s146
          %s148 = smul.addr %s144, 2
          %s149 = smul.addr %s148, 128
          %s150 = scalar_lea.hbm %s1, %s149
          %s151 = sshll.u32 %s143, 4
          %s152 = int_to_ptr.vmem [resolvable:$true] %s151
          %157 = dma.hbm_to_vmem [thread:$0]  %s150, 2048, %s152, %s140, 256, 256, 16
        $region24: #{tpu_custom_call.1} parent=15 // pred_fallthru
          _
      $region16: #{tpu_custom_call.1} parent=5 // pred_fallthru
        _
      %p158 = scmp.le.s32.totalorder 1, %s17
      %p159 = scmp.lt.s32.totalorder %s17, 9
      %p160 = pnand %p158, %p159
      %p161 = pneg %p160
      // Predicated region
      $region25: #{tpu_custom_call.1} parent=5 // pred_check
        _
      $region26: #{tpu_custom_call.1} parent=5 // pred_check_branch
        %163 = sbr.rel (%p160) target = $region28
      $region27: #{tpu_custom_call.1} parent=5 // pred_region
        %s164 = ssub.s32 %s17, 1
        %s165 = sand.u32 %s30, 1
        %s166 = scalar_lea.sflag [#allocation3], %s165
        %s167 = sand.u32 %s30, 1
        %s168 = smul.addr %s167, 128
        %s169 = scalar_lea.vmem [#allocation2], %s168
        // Predicated region
        $region29: #{tpu_custom_call.1} parent=27 // pred_check
          %p170 = pneg %p43
        $region30: #{tpu_custom_call.1} parent=27 // pred_check_branch
          %172 = sbr.rel (%p170) target = $region32
        $region31: #{tpu_custom_call.1} parent=27 // pred_region
          %173 = dma.done %s166, 2048
        $region32: #{tpu_custom_call.1} parent=27 // pred_fallthru
          _
        %s174 = sand.u32 %s56, 1
        %s175 = scalar_lea.sflag [#allocation6], %s174
        %s176 = sand.u32 %s56, 1
        %s177 = smul.addr %s176, 128
        %s178 = scalar_lea.vmem [#allocation5], %s177
        // Predicated region
        $region33: #{tpu_custom_call.1} parent=27 // pred_check
          %p179 = pneg %p69
        $region34: #{tpu_custom_call.1} parent=27 // pred_check_branch
          %181 = sbr.rel (%p179) target = $region36
        $region35: #{tpu_custom_call.1} parent=27 // pred_region
          %182 = dma.done %s175, 2048
        $region36: #{tpu_custom_call.1} parent=27 // pred_fallthru
          _
        %s183 = sand.u32 %s30, 1
        %s184 = scalar_lea.sflag [#allocation3], %s183
        %s185 = sand.u32 %s30, 1
        %s186 = smul.addr %s185, 128
        %s187 = scalar_lea.vmem [#allocation2], %s186
        %p188 = pneg %p43
        %p189 = pneg %p40
        %s190 = sand.u32 %s56, 1
        %s191 = scalar_lea.sflag [#allocation6], %s190
        %s192 = sand.u32 %s56, 1
        %s193 = smul.addr %s192, 128
        %s194 = scalar_lea.vmem [#allocation5], %s193
        %p195 = pneg %p69
        %p196 = pneg %p66
        %p197 = pneg %p95
        %p198 = pneg %p92
        %s199 = sand.u32 %s82, 1
        %s200 = scalar_lea.sflag [#allocation4], %s199
        %s201 = sand.u32 %s82, 1
        %s202 = scalar_lea.vmem [#allocation7], %s201
        %s203 = smul.u32 8, %s22
        %s204 = smul.u32 8, %s22
        %v205 = vld [vmem:[%s169] sm:$0xff]
        %v206 = vld [vmem:[%s169 + $0x8] sm:$0xff]
        %v207 = vld [vmem:[%s169 + $0x10] sm:$0xff]
        %v208 = vld [vmem:[%s169 + $0x18] sm:$0xff]
        %v209 = vld [vmem:[%s169 + $0x20] sm:$0xff]
        %v210 = vld [vmem:[%s169 + $0x28] sm:$0xff]
        %v211 = vld [vmem:[%s169 + $0x30] sm:$0xff]
        %v212 = vld [vmem:[%s169 + $0x38] sm:$0xff]
        %v213 = vld [vmem:[%s169 + $0x40] sm:$0xff]
        %v214 = vld [vmem:[%s169 + $0x48] sm:$0xff]
        %v215 = vld [vmem:[%s169 + $0x50] sm:$0xff]
        %v216 = vld [vmem:[%s169 + $0x58] sm:$0xff]
        %v217 = vld [vmem:[%s169 + $0x60] sm:$0xff]
        %v218 = vld [vmem:[%s169 + $0x68] sm:$0xff]
        %v219 = vld [vmem:[%s169 + $0x70] sm:$0xff]
        %v220 = vld [vmem:[%s169 + $0x78] sm:$0xff]
        %v221 = vmul.f32 %v205, 0.25
        %v222 = vmul.f32 %v206, 0.25
        %v223 = vmul.f32 %v207, 0.25
        %v224 = vmul.f32 %v208, 0.25
        %v225 = vmul.f32 %v209, 0.25
        %v226 = vmul.f32 %v210, 0.25
        %v227 = vmul.f32 %v211, 0.25
        %v228 = vmul.f32 %v212, 0.25
        %v229 = vmul.f32 %v213, 0.25
        %v230 = vmul.f32 %v214, 0.25
        %v231 = vmul.f32 %v215, 0.25
        %v232 = vmul.f32 %v216, 0.25
        %v233 = vmul.f32 %v217, 0.25
        %v234 = vmul.f32 %v218, 0.25
        %v235 = vmul.f32 %v219, 0.25
        %v236 = vmul.f32 %v220, 0.25
        %v237 = vld [vmem:[%s178] sm:$0xff]
        %v238 = vld [vmem:[%s178 + $0x8] sm:$0xff]
        %v239 = vld [vmem:[%s178 + $0x10] sm:$0xff]
        %v240 = vld [vmem:[%s178 + $0x18] sm:$0xff]
        %v241 = vld [vmem:[%s178 + $0x20] sm:$0xff]
        %v242 = vld [vmem:[%s178 + $0x28] sm:$0xff]
        %v243 = vld [vmem:[%s178 + $0x30] sm:$0xff]
        %v244 = vld [vmem:[%s178 + $0x38] sm:$0xff]
        %v245 = vld [vmem:[%s178 + $0x40] sm:$0xff]
        %v246 = vld [vmem:[%s178 + $0x48] sm:$0xff]
        %v247 = vld [vmem:[%s178 + $0x50] sm:$0xff]
        %v248 = vld [vmem:[%s178 + $0x58] sm:$0xff]
        %v249 = vld [vmem:[%s178 + $0x60] sm:$0xff]
        %v250 = vld [vmem:[%s178 + $0x68] sm:$0xff]
        %v251 = vld [vmem:[%s178 + $0x70] sm:$0xff]
        %v252 = vld [vmem:[%s178 + $0x78] sm:$0xff]
        %v253 = vmul.f32 %v237, 0.25
        %v254 = vmul.f32 %v238, 0.25
        %v255 = vmul.f32 %v239, 0.25
        %v256 = vmul.f32 %v240, 0.25
        %v257 = vmul.f32 %v241, 0.25
        %v258 = vmul.f32 %v242, 0.25
        %v259 = vmul.f32 %v243, 0.25
        %v260 = vmul.f32 %v244, 0.25
        %v261 = vmul.f32 %v245, 0.25
        %v262 = vmul.f32 %v246, 0.25
        %v263 = vmul.f32 %v247, 0.25
        %v264 = vmul.f32 %v248, 0.25
        %v265 = vmul.f32 %v249, 0.25
        %v266 = vmul.f32 %v250, 0.25
        %v267 = vmul.f32 %v251, 0.25
        %v268 = vmul.f32 %v252, 0.25
        %v269 = vmax.f32 %v221, %v222
        %270 = vmax.xlane.f32.xlu0 %v269
        %v271 = vpop.xlane.xlu0 %270
        %v272 = vmax.f32 %v223, %v224
        %273 = vmax.xlane.f32.xlu0 %v272
        %v274 = vpop.xlane.xlu0 %273
        %v275 = vmax.f32 %v225, %v226
        %276 = vmax.xlane.f32.xlu0 %v275
        %v277 = vpop.xlane.xlu0 %276
        %v278 = vmax.f32 %v227, %v228
        %279 = vmax.xlane.f32.xlu0 %v278
        %v280 = vpop.xlane.xlu0 %279
        %v281 = vmax.f32 %v229, %v230
        %282 = vmax.xlane.f32.xlu0 %v281
        %v283 = vpop.xlane.xlu0 %282
        %v284 = vmax.f32 %v231, %v232
        %285 = vmax.xlane.f32.xlu0 %v284
        %v286 = vpop.xlane.xlu0 %285
        %v287 = vmax.f32 %v233, %v234
        %288 = vmax.xlane.f32.xlu0 %v287
        %v289 = vpop.xlane.xlu0 %288
        %v290 = vmax.f32 %v235, %v236
        %291 = vmax.xlane.f32.xlu0 %v290
        %v292 = vpop.xlane.xlu0 %291
        %v293 = vsub.f32 %v221, %v271
        %v294 = vsub.f32 %v222, %v271
        %v295 = vsub.f32 %v223, %v274
        %v296 = vsub.f32 %v224, %v274
        %v297 = vsub.f32 %v225, %v277
        %v298 = vsub.f32 %v226, %v277
        %v299 = vsub.f32 %v227, %v280
        %v300 = vsub.f32 %v228, %v280
        %v301 = vsub.f32 %v229, %v283
        %v302 = vsub.f32 %v230, %v283
        %v303 = vsub.f32 %v231, %v286
        %v304 = vsub.f32 %v232, %v286
        %v305 = vsub.f32 %v233, %v289
        %v306 = vsub.f32 %v234, %v289
        %v307 = vsub.f32 %v235, %v292
        %v308 = vsub.f32 %v236, %v292
        %v309 = vmul.f32 %v293, 1.442695
        %v310 = vpow.pop %v309
        %v311 = vmul.f32 %v294, 1.442695
        %v312 = vpow.pop %v311
        %v313 = vmul.f32 %v295, 1.442695
        %v314 = vpow.pop %v313
        %v315 = vmul.f32 %v296, 1.442695
        %v316 = vpow.pop %v315
        %v317 = vmul.f32 %v297, 1.442695
        %v318 = vpow.pop %v317
        %v319 = vmul.f32 %v298, 1.442695
        %v320 = vpow.pop %v319
        %v321 = vmul.f32 %v299, 1.442695
        %v322 = vpow.pop %v321
        %v323 = vmul.f32 %v300, 1.442695
        %v324 = vpow.pop %v323
        %v325 = vmul.f32 %v301, 1.442695
        %v326 = vpow.pop %v325
        %v327 = vmul.f32 %v302, 1.442695
        %v328 = vpow.pop %v327
        %v329 = vmul.f32 %v303, 1.442695
        %v330 = vpow.pop %v329
        %v331 = vmul.f32 %v304, 1.442695
        %v332 = vpow.pop %v331
        %v333 = vmul.f32 %v305, 1.442695
        %v334 = vpow.pop %v333
        %v335 = vmul.f32 %v306, 1.442695
        %v336 = vpow.pop %v335
        %v337 = vmul.f32 %v307, 1.442695
        %v338 = vpow.pop %v337
        %v339 = vmul.f32 %v308, 1.442695
        %v340 = vpow.pop %v339
        %v341 = vadd.f32 %v310, %v312
        %342 = vadd.xlane.f32.xlu0 %v341
        %v343 = vpop.xlane.xlu0 %342
        %v344 = vadd.f32 %v314, %v316
        %345 = vadd.xlane.f32.xlu0 %v344
        %v346 = vpop.xlane.xlu0 %345
        %v347 = vadd.f32 %v318, %v320
        %348 = vadd.xlane.f32.xlu0 %v347
        %v349 = vpop.xlane.xlu0 %348
        %v350 = vadd.f32 %v322, %v324
        %351 = vadd.xlane.f32.xlu0 %v350
        %v352 = vpop.xlane.xlu0 %351
        %v353 = vadd.f32 %v326, %v328
        %354 = vadd.xlane.f32.xlu0 %v353
        %v355 = vpop.xlane.xlu0 %354
        %v356 = vadd.f32 %v330, %v332
        %357 = vadd.xlane.f32.xlu0 %v356
        %v358 = vpop.xlane.xlu0 %357
        %v359 = vadd.f32 %v334, %v336
        %360 = vadd.xlane.f32.xlu0 %v359
        %v361 = vpop.xlane.xlu0 %360
        %v362 = vadd.f32 %v338, %v340
        %363 = vadd.xlane.f32.xlu0 %v362
        %v364 = vpop.xlane.xlu0 %363
        %v365 = vlog2.pop %v343
        %v366 = vmul.f32 %v365, 0.6931472
        %v367 = vlog2.pop %v346
        %v368 = vmul.f32 %v367, 0.6931472
        %v369 = vlog2.pop %v349
        %v370 = vmul.f32 %v369, 0.6931472
        %v371 = vlog2.pop %v352
        %v372 = vmul.f32 %v371, 0.6931472
        %v373 = vlog2.pop %v355
        %v374 = vmul.f32 %v373, 0.6931472
        %v375 = vlog2.pop %v358
        %v376 = vmul.f32 %v375, 0.6931472
        %v377 = vlog2.pop %v361
        %v378 = vmul.f32 %v377, 0.6931472
        %v379 = vlog2.pop %v364
        %v380 = vmul.f32 %v379, 0.6931472
        %v381 = vmax.f32 %v253, %v254
        %382 = vmax.xlane.f32.xlu0 %v381
        %v383 = vpop.xlane.xlu0 %382
        %v384 = vmax.f32 %v255, %v256
        %385 = vmax.xlane.f32.xlu0 %v384
        %v386 = vpop.xlane.xlu0 %385
        %v387 = vmax.f32 %v257, %v258
        %388 = vmax.xlane.f32.xlu0 %v387
        %v389 = vpop.xlane.xlu0 %388
        %v390 = vmax.f32 %v259, %v260
        %391 = vmax.xlane.f32.xlu0 %v390
        %v392 = vpop.xlane.xlu0 %391
        %v393 = vmax.f32 %v261, %v262
        %394 = vmax.xlane.f32.xlu0 %v393
        %v395 = vpop.xlane.xlu0 %394
        %v396 = vmax.f32 %v263, %v264
        %397 = vmax.xlane.f32.xlu0 %v396
        %v398 = vpop.xlane.xlu0 %397
        %v399 = vmax.f32 %v265, %v266
        %400 = vmax.xlane.f32.xlu0 %v399
        %v401 = vpop.xlane.xlu0 %400
        %v402 = vmax.f32 %v267, %v268
        %403 = vmax.xlane.f32.xlu0 %v402
        %v404 = vpop.xlane.xlu0 %403
        %v405 = vsub.f32 %v253, %v383
        %v406 = vsub.f32 %v254, %v383
        %v407 = vsub.f32 %v255, %v386
        %v408 = vsub.f32 %v256, %v386
        %v409 = vsub.f32 %v257, %v389
        %v410 = vsub.f32 %v258, %v389
        %v411 = vsub.f32 %v259, %v392
        %v412 = vsub.f32 %v260, %v392
        %v413 = vsub.f32 %v261, %v395
        %v414 = vsub.f32 %v262, %v395
        %v415 = vsub.f32 %v263, %v398
        %v416 = vsub.f32 %v264, %v398
        %v417 = vsub.f32 %v265, %v401
        %v418 = vsub.f32 %v266, %v401
        %v419 = vsub.f32 %v267, %v404
        %v420 = vsub.f32 %v268, %v404
        %v421 = vmul.f32 %v405, 1.442695
        %v422 = vpow.pop %v421
        %v423 = vmul.f32 %v406, 1.442695
        %v424 = vpow.pop %v423
        %v425 = vmul.f32 %v407, 1.442695
        %v426 = vpow.pop %v425
        %v427 = vmul.f32 %v408, 1.442695
        %v428 = vpow.pop %v427
        %v429 = vmul.f32 %v409, 1.442695
        %v430 = vpow.pop %v429
        %v431 = vmul.f32 %v410, 1.442695
        %v432 = vpow.pop %v431
        %v433 = vmul.f32 %v411, 1.442695
        %v434 = vpow.pop %v433
        %v435 = vmul.f32 %v412, 1.442695
        %v436 = vpow.pop %v435
        %v437 = vmul.f32 %v413, 1.442695
        %v438 = vpow.pop %v437
        %v439 = vmul.f32 %v414, 1.442695
        %v440 = vpow.pop %v439
        %v441 = vmul.f32 %v415, 1.442695
        %v442 = vpow.pop %v441
        %v443 = vmul.f32 %v416, 1.442695
        %v444 = vpow.pop %v443
        %v445 = vmul.f32 %v417, 1.442695
        %v446 = vpow.pop %v445
        %v447 = vmul.f32 %v418, 1.442695
        %v448 = vpow.pop %v447
        %v449 = vmul.f32 %v419, 1.442695
        %v450 = vpow.pop %v449
        %v451 = vmul.f32 %v420, 1.442695
        %v452 = vpow.pop %v451
        %v453 = vadd.f32 %v422, %v424
        %454 = vadd.xlane.f32.xlu0 %v453
        %v455 = vpop.xlane.xlu0 %454
        %v456 = vadd.f32 %v426, %v428
        %457 = vadd.xlane.f32.xlu0 %v456
        %v458 = vpop.xlane.xlu0 %457
        %v459 = vadd.f32 %v430, %v432
        %460 = vadd.xlane.f32.xlu0 %v459
        %v461 = vpop.xlane.xlu0 %460
        %v462 = vadd.f32 %v434, %v436
        %463 = vadd.xlane.f32.xlu0 %v462
        %v464 = vpop.xlane.xlu0 %463
        %v465 = vadd.f32 %v438, %v440
        %466 = vadd.xlane.f32.xlu0 %v465
        %v467 = vpop.xlane.xlu0 %466
        %v468 = vadd.f32 %v442, %v444
        %469 = vadd.xlane.f32.xlu0 %v468
        %v470 = vpop.xlane.xlu0 %469
        %v471 = vadd.f32 %v446, %v448
        %472 = vadd.xlane.f32.xlu0 %v471
        %v473 = vpop.xlane.xlu0 %472
        %v474 = vadd.f32 %v450, %v452
        %475 = vadd.xlane.f32.xlu0 %v474
        %v476 = vpop.xlane.xlu0 %475
        %v477 = vsub.f32 %v405, %v293
        %v478 = vsub.f32 %v406, %v294
        %v479 = vsub.f32 %v407, %v295
        %v480 = vsub.f32 %v408, %v296
        %v481 = vsub.f32 %v409, %v297
        %v482 = vsub.f32 %v410, %v298
        %v483 = vsub.f32 %v411, %v299
        %v484 = vsub.f32 %v412, %v300
        %v485 = vsub.f32 %v413, %v301
        %v486 = vsub.f32 %v414, %v302
        %v487 = vsub.f32 %v415, %v303
        %v488 = vsub.f32 %v416, %v304
        %v489 = vsub.f32 %v417, %v305
        %v490 = vsub.f32 %v418, %v306
        %v491 = vsub.f32 %v419, %v307
        %v492 = vsub.f32 %v420, %v308
        %v493 = vmul.f32 %v422, %v477
        %v494 = vmul.f32 %v424, %v478
        %v495 = vmul.f32 %v426, %v479
        %v496 = vmul.f32 %v428, %v480
        %v497 = vmul.f32 %v430, %v481
        %v498 = vmul.f32 %v432, %v482
        %v499 = vmul.f32 %v434, %v483
        %v500 = vmul.f32 %v436, %v484
        %v501 = vmul.f32 %v438, %v485
        %v502 = vmul.f32 %v440, %v486
        %v503 = vmul.f32 %v442, %v487
        %v504 = vmul.f32 %v444, %v488
        %v505 = vmul.f32 %v446, %v489
        %v506 = vmul.f32 %v448, %v490
        %v507 = vmul.f32 %v450, %v491
        %v508 = vmul.f32 %v452, %v492
        %v509 = vadd.f32 %v493, %v494
        %510 = vadd.xlane.f32.xlu0 %v509
        %v511 = vpop.xlane.xlu0 %510
        %v512 = vadd.f32 %v495, %v496
        %513 = vadd.xlane.f32.xlu0 %v512
        %v514 = vpop.xlane.xlu0 %513
        %v515 = vadd.f32 %v497, %v498
        %516 = vadd.xlane.f32.xlu0 %v515
        %v517 = vpop.xlane.xlu0 %516
        %v518 = vadd.f32 %v499, %v500
        %519 = vadd.xlane.f32.xlu0 %v518
        %v520 = vpop.xlane.xlu0 %519
        %v521 = vadd.f32 %v501, %v502
        %522 = vadd.xlane.f32.xlu0 %v521
        %v523 = vpop.xlane.xlu0 %522
        %v524 = vadd.f32 %v503, %v504
        %525 = vadd.xlane.f32.xlu0 %v524
        %v526 = vpop.xlane.xlu0 %525
        %v527 = vadd.f32 %v505, %v506
        %528 = vadd.xlane.f32.xlu0 %v527
        %v529 = vpop.xlane.xlu0 %528
        %v530 = vadd.f32 %v507, %v508
        %531 = vadd.xlane.f32.xlu0 %v530
        %v532 = vpop.xlane.xlu0 %531
        %v533 = vrcp.pop %v455
        %v534 = vmul.f32 %v511, %v533
        %v535 = vrcp.pop %v458
        %v536 = vmul.f32 %v514, %v535
        %v537 = vrcp.pop %v461
        %v538 = vmul.f32 %v517, %v537
        %v539 = vrcp.pop %v464
        %v540 = vmul.f32 %v520, %v539
        %v541 = vrcp.pop %v467
        %v542 = vmul.f32 %v523, %v541
        %v543 = vrcp.pop %v470
        %v544 = vmul.f32 %v526, %v543
        %v545 = vrcp.pop %v473
        %v546 = vmul.f32 %v529, %v545
        %v547 = vrcp.pop %v476
        %v548 = vmul.f32 %v532, %v547
        %v549 = vlog2.pop %v455
        %v550 = vmul.f32 %v549, 0.6931472
        %v551 = vlog2.pop %v458
        %v552 = vmul.f32 %v551, 0.6931472
        %v553 = vlog2.pop %v461
        %v554 = vmul.f32 %v553, 0.6931472
        %v555 = vlog2.pop %v464
        %v556 = vmul.f32 %v555, 0.6931472
        %v557 = vlog2.pop %v467
        %v558 = vmul.f32 %v557, 0.6931472
        %v559 = vlog2.pop %v470
        %v560 = vmul.f32 %v559, 0.6931472
        %v561 = vlog2.pop %v473
        %v562 = vmul.f32 %v561, 0.6931472
        %v563 = vlog2.pop %v476
        %v564 = vmul.f32 %v563, 0.6931472
        %v565 = vsub.f32 %v366, %v550
        %v566 = vsub.f32 %v368, %v552
        %v567 = vsub.f32 %v370, %v554
        %v568 = vsub.f32 %v372, %v556
        %v569 = vsub.f32 %v374, %v558
        %v570 = vsub.f32 %v376, %v560
        %v571 = vsub.f32 %v378, %v562
        %v572 = vsub.f32 %v380, %v564
        %v573 = vadd.f32 %v534, %v565
        %v574 = vadd.f32 %v536, %v566
        %v575 = vadd.f32 %v538, %v567
        %v576 = vadd.f32 %v540, %v568
        %v577 = vadd.f32 %v542, %v569
        %v578 = vadd.f32 %v544, %v570
        %v579 = vadd.f32 %v546, %v571
        %v580 = vadd.f32 %v548, %v572
        %v581 = vadd.f32 %v573, %v574
        %v582 = vadd.f32 %v581, %v575
        %v583 = vadd.f32 %v582, %v576
        %v584 = vadd.f32 %v583, %v577
        %v585 = vadd.f32 %v584, %v578
        %v586 = vadd.f32 %v585, %v579
        %v587 = vadd.f32 %v586, %v580
        %v588 = vrot.slane %v587, 4
        %v589 = vadd.f32 %v587, %v588
        %v590 = vrot.slane %v589, 2
        %v591 = vadd.f32 %v589, %v590
        %v592 = vrot.slane %v591, 1
        %v593 = vadd.f32 %v591, %v592
        %594 = vst [vmem:[%s202] sm:$0x1] %v593
        %s595 = sand.u32 %s82, 1
        %s596 = scalar_lea.sflag [#allocation4], %s595
        %s597 = sand.u32 %s82, 1
        %s598 = scalar_lea.vmem [#allocation7], %s597
        // Predicated region
        $region37: #{tpu_custom_call.1} parent=27 // pred_check
          %p599 = pneg %p92
        $region38: #{tpu_custom_call.1} parent=27 // pred_check_branch
          %601 = sbr.rel (%p599) target = $region40
        $region39: #{tpu_custom_call.1} parent=27 // pred_region
          %s603 = ssub.s32 16, 16
          %604 = vsyncadd %s596, %s603
          %s605 = smul.addr %s22, 16
          %s606 = scalar_lea.hbm %s2, %s605
          %s608 = sshll.u32 %s598, 4
          %s609 = int_to_ptr.vmem [resolvable:$true] %s608
          %611 = dma.vmem_to_hbm [thread:$0]  %s609, 16, %s606, %s596
        $region40: #{tpu_custom_call.1} parent=27 // pred_fallthru
          _
      $region28: #{tpu_custom_call.1} parent=5 // pred_fallthru
        _
      %p612 = scmp.le.s32.totalorder 2, %s17
      // Predicated region
      $region41: #{tpu_custom_call.1} parent=5 // pred_check
        %p613 = pneg %p612
      $region42: #{tpu_custom_call.1} parent=5 // pred_check_branch
        %615 = sbr.rel (%p613) target = $region44
      $region43: #{tpu_custom_call.1} parent=5 // pred_region
        %s616 = ssub.s32 %s17, 2
        // Predicated region
        $region45: #{tpu_custom_call.1} parent=43 // pred_check
          %p617 = pneg %p98
        $region46: #{tpu_custom_call.1} parent=43 // pred_check_branch
          %619 = sbr.rel (%p617) target = $region48
        $region47: #{tpu_custom_call.1} parent=43 // pred_region
          %s620 = sand.u32 %s83, 1
          %s621 = scalar_lea.sflag [#allocation4], %s620
          %s622 = sand.u32 %s83, 1
          %s623 = scalar_lea.vmem [#allocation7], %s622
          %624 = dma.done %s621, 16
        $region48: #{tpu_custom_call.1} parent=43 // pred_fallthru
          _
      $region44: #{tpu_custom_call.1} parent=5 // pred_fallthru
        _
    $region6: #{tpu_custom_call.1} parent=1 // loop_footer
      %s21 = sadd.s32 1, %s17
    $region7: #{tpu_custom_call.1} parent=1 // loop_footer_branch
      %16 = sbr.rel target = $region3
    $region8: #{tpu_custom_call.1} parent=1 // loop_exit
      _
    %625 = vsyncpa [#allocation3], 1
    %s626 = scalar_lea.sflag [#allocation3], 1
    %627 = vsyncpa %s626, 1
    %628 = vsyncpa [#allocation6], 1
    %s629 = scalar_lea.sflag [#allocation6], 1
    %630 = vsyncpa %s629, 1
    %631 = vsyncpa [#allocation4], 1
    %s632 = scalar_lea.sflag [#allocation4], 1
    %633 = vsyncpa %s632, 1

</llo_original>
